<compile_context>
chip_gen: v7x
topology: tpu7x:2x2x1
jax: 0.10.0
libtpu: 0.0.40
codegen_flags: <defaults>
</compile_context>

<pallas_src>
import functools

import jax
import jax.numpy as jnp
from jax.experimental import pallas as pl
from jax.experimental.pallas import tpu as pltpu


def _round_up(x, m):
    return (x + m - 1) // m * m


def _choose_t_tile(T):
    # Lane-dense tiles (multiples of 128) when possible; sweep 512-2048 per chip.
    if T % 128 != 0 or T <= 1024:
        return T
    tile = 1024
    while T % tile:
        tile -= 128
    return tile


def _wavenet_block_kernel(xpad_ref, w1_ref, b1_ref, w2_ref, b2_ref,
                          res_ref, skip_ref, *,
                          kernel_size, dilation, conv_channels,
                          left_pad, t_tile, num_t_tiles):
    # xpad_ref: (1, C_pad, T_pad)   zero-padded input (channels padded to x8), f32
    # w1_ref  : (2*C_conv, K*C_pad) fused dilated-conv weights, bf16
    # b1_ref  : (2*C_conv, 1)       f32
    # w2_ref  : (C_in, C_conv)      1x1 conv weights, bf16
    # b2_ref  : (C_in, 1)           f32
    # res_ref : (1, C_in, t_tile)   output: one_by_one_output + x
    # skip_ref: (1, C_in, t_tile)   output: one_by_one_output
    halo = dilation * (kernel_size - 1)
    c_in = res_ref.shape[1]

    if num_t_tiles == 1:
        window = xpad_ref[0]                                   # (C_pad, T_pad) f32
    else:
        start = pl.multiple_of(pl.program_id(1) * t_tile, t_tile)
        window = xpad_ref[0, :, pl.ds(start, t_tile + halo)]   # (C_pad, tT+halo)

    # im2col: stack the K dilated taps along the (8-aligned) channel axis so the
    # dilated conv becomes a single MXU matmul with contraction depth K*C_pad.
    taps = [window[:, k * dilation:k * dilation + t_tile]
            for k in range(kernel_size)]                       # K x (C_pad, tT)
    xcol = jnp.concatenate(taps, axis=0).astype(jnp.bfloat16)  # (K*C_pad, tT)

    acc = jnp.dot(w1_ref[...], xcol,
                  preferred_element_type=jnp.float32)          # (2*C_conv, tT) f32
    acc = acc + b1_ref[...]                                    # bias, f32

    # chunk(2, dim=channels): first half -> leaky-tanh path, second -> gate.
    t_part = acc[:conv_channels, :]
    s_part = acc[conv_channels:, :]
    t_act = jnp.tanh(t_part) * 0.95 + 0.05 * t_part
    gate = 0.5 * (jnp.tanh(0.5 * s_part) + 1.0)                # == sigmoid(s), 1 EUP op
    act = t_act * gate                                         # (C_conv, tT) f32

    # 1x1 conv == matmul over channels; lane-dense (C_in, tT) output.
    y = jnp.dot(w2_ref[...], act.astype(jnp.bfloat16),
                preferred_element_type=jnp.float32) + b2_ref[...]

    residual = window[:c_in, left_pad:left_pad + t_tile]       # original x, f32
    skip_ref[0] = y.astype(skip_ref.dtype)
    res_ref[0] = (y + residual).astype(res_ref.dtype)


def wavenet_block(x_nct, w1, b1, w2, b2, *, kernel_size, dilation, t_tile=None):
    """x_nct: (B, C_in, T) (PyTorch NCW). Returns (residual, skip) in NCW."""
    B, C_in, T = x_nct.shape
    two_cc, c_in_w, K = w1.shape
    assert K == kernel_size and c_in_w == C_in
    conv_channels = two_cc // 2

    total_pad = dilation * (kernel_size - 1)
    left = total_pad // 2
    right = total_pad - left
    T_pad = T + total_pad
    C_pad = _round_up(C_in, 8)          # keep the im2col concat sublane-aligned

    x = x_nct.astype(jnp.float32)
    # Single fused pad: 'same' time padding + channel padding to a multiple of 8.
    x_pad = jnp.pad(x, ((0, 0), (0, C_pad - C_in), (left, right)))  # (B, C_pad, T_pad)

    # Fused im2col weights: w1_col[o, k*C_pad + c] = w1[o, c, k]; bf16 for the MXU.
    w1_p = jnp.pad(w1, ((0, 0), (0, C_pad - C_in), (0, 0)))          # (2Cc, C_pad, K)
    w1_col = jnp.transpose(w1_p, (0, 2, 1)).reshape(two_cc, K * C_pad).astype(jnp.bfloat16)
    b1_col = b1.reshape(two_cc, 1).astype(jnp.float32)
    w2_col = w2[:, :, 0].astype(jnp.bfloat16)                        # (C_in, C_conv)
    b2_col = b2.reshape(C_in, 1).astype(jnp.float32)

    if t_tile is None:
        t_tile = _choose_t_tile(T)
    assert T % t_tile == 0
    num_t = T // t_tile

    kern = functools.partial(
        _wavenet_block_kernel,
        kernel_size=kernel_size, dilation=dilation,
        conv_channels=conv_channels, left_pad=left,
        t_tile=t_tile, num_t_tiles=num_t)

    res, skip = pl.pallas_call(
        kern,
        out_shape=(jax.ShapeDtypeStruct((B, C_in, T), jnp.float32),
                   jax.ShapeDtypeStruct((B, C_in, T), jnp.float32)),
        grid=(B, num_t),
        in_specs=[
            # full padded sequence per batch element (re-fetched only when b changes)
            pl.BlockSpec((1, C_pad, T_pad), lambda b, t: (b, 0, 0)),
            # weights / biases stay resident across the whole grid
            pl.BlockSpec((two_cc, K * C_pad), lambda b, t: (0, 0)),
            pl.BlockSpec((two_cc, 1), lambda b, t: (0, 0)),
            pl.BlockSpec((C_in, conv_channels), lambda b, t: (0, 0)),
            pl.BlockSpec((C_in, 1), lambda b, t: (0, 0)),
        ],
        out_specs=(
            pl.BlockSpec((1, C_in, t_tile), lambda b, t: (b, 0, t)),
            pl.BlockSpec((1, C_in, t_tile), lambda b, t: (b, 0, t)),
        ),
        compiler_params=pltpu.CompilerParams(
            dimension_semantics=("parallel", "parallel")),
    )(x_pad, w1_col, b1_col, w2_col, b2_col)
    return res, skip


def _wavenet_block_ref(x, w1, b1, w2, b2, *, kernel_size, dilation):
    """Pure-JAX f32 reference with PyTorch Conv1d 'same' semantics."""
    B, C_in, T = x.shape
    total = dilation * (kernel_size - 1)
    left = total // 2
    xp = jnp.pad(x, ((0, 0), (0, 0), (left, total - left)))
    conv = jnp.zeros((B, w1.shape[0], T), jnp.float32)
    for k in range(kernel_size):
        conv = conv + jnp.einsum('oc,bct->bot', w1[:, :, k],
                                 xp[:, :, k * dilation:k * dilation + T])
    conv = conv + b1[None, :, None]
    cc = w1.shape[0] // 2
    th, sg = conv[:, :cc], conv[:, cc:]
    th = jnp.tanh(th) * 0.95 + 0.05 * th
    act = th * jax.nn.sigmoid(sg)
    y = jnp.einsum('oc,bct->bot', w2[:, :, 0], act) + b2[None, :, None]
    return y + x, y


if __name__ == "__main__":
    # Small deterministic config consistent with the module.
    B, C_in, T = 2, 4, 16
    conv_channels = 8
    kernel_size = 3
    dilation = 2

    key = jax.random.PRNGKey(0)
    k_x, k_w1, k_b1, k_w2, k_b2 = jax.random.split(key, 5)

    x = jax.random.normal(k_x, (B, C_in, T), dtype=jnp.float32)
    # PyTorch Conv1d parameter shapes:
    #  conv:        weight (2*conv_channels, C_in, K), bias (2*conv_channels,)
    #  one_by_one:  weight (C_in, conv_channels, 1),   bias (C_in,)
    w1 = 0.1 * jax.random.normal(k_w1, (2 * conv_channels, C_in, kernel_size),
                                 dtype=jnp.float32)
    b1 = 0.1 * jax.random.normal(k_b1, (2 * conv_channels,), dtype=jnp.float32)
    w2 = 0.1 * jax.random.normal(k_w2, (C_in, conv_channels, 1), dtype=jnp.float32)
    b2 = 0.1 * jax.random.normal(k_b2, (C_in,), dtype=jnp.float32)

    res, skip = wavenet_block(x, w1, b1, w2, b2,
                              kernel_size=kernel_size, dilation=dilation)
    jax.block_until_ready((res, skip))

    assert res.shape == (B, C_in, T) and skip.shape == (B, C_in, T)

    # Relaxed tolerance vs f32 reference (bf16 MXU operands, f32 accumulation).
    res_ref, skip_ref = _wavenet_block_ref(x, w1, b1, w2, b2,
                                           kernel_size=kernel_size,
                                           dilation=dilation)
    assert bool(jnp.allclose(res, res_ref, atol=5e-2, rtol=5e-2))
    assert bool(jnp.allclose(skip, skip_ref, atol=5e-2, rtol=5e-2))

    print("KERNEL_OK")
</pallas_src>

<mosaic_0001>
module attributes {stable_mosaic.version = 11 : i64} {
  func.func @_wavenet_block_kernel(%arg0: i32, %arg1: i32, %arg2: memref<1x8x20xf32, #tpu.memory_space<vmem>>, %arg3: memref<16x24xbf16, #tpu.memory_space<vmem>>, %arg4: memref<16x1xf32, #tpu.memory_space<vmem>>, %arg5: memref<4x8xbf16, #tpu.memory_space<vmem>>, %arg6: memref<4x1xf32, #tpu.memory_space<vmem>>, %arg7: memref<1x4x16xf32, #tpu.memory_space<vmem>>, %arg8: memref<1x4x16xf32, #tpu.memory_space<vmem>>) attributes {dimension_semantics = [#tpu.dimension_semantics<parallel>, #tpu.dimension_semantics<parallel>], iteration_bounds = array<i64: 2, 1>, scalar_prefetch = 0 : i64, scratch_operands = 0 : i64, tpu.core_type = #tpu.core_type<tc>, window_params = [{transform_indices = @transform_0, window_bounds = array<i64: 1, 8, 20>}, {pipeline_mode = #tpu.pipeline_mode<synchronous>, transform_indices = @transform_1, window_bounds = array<i64: 16, 24>}, {pipeline_mode = #tpu.pipeline_mode<synchronous>, transform_indices = @transform_2, window_bounds = array<i64: 16, 1>}, {pipeline_mode = #tpu.pipeline_mode<synchronous>, transform_indices = @transform_3, window_bounds = array<i64: 4, 8>}, {pipeline_mode = #tpu.pipeline_mode<synchronous>, transform_indices = @transform_4, window_bounds = array<i64: 4, 1>}, {transform_indices = @transform_5, window_bounds = array<i64: 1, 4, 16>}, {transform_indices = @transform_6, window_bounds = array<i64: 1, 4, 16>}]} {
    %c0 = arith.constant 0 : index
    %c0_0 = arith.constant 0 : index
    %c0_1 = arith.constant 0 : index
    %0 = vector.load %arg2[%c0, %c0_0, %c0_1] : memref<1x8x20xf32, #tpu.memory_space<vmem>>, vector<1x8x20xf32>
    %1 = vector.shape_cast %0 : vector<1x8x20xf32> to vector<8x20xf32>
    %2 = vector.extract_strided_slice %1 {offsets = [0, 0], sizes = [8, 16], strides = [1, 1]} : vector<8x20xf32> to vector<8x16xf32>
    %3 = vector.extract_strided_slice %1 {offsets = [0, 2], sizes = [8, 16], strides = [1, 1]} : vector<8x20xf32> to vector<8x16xf32>
    %4 = vector.extract_strided_slice %1 {offsets = [0, 4], sizes = [8, 16], strides = [1, 1]} : vector<8x20xf32> to vector<8x16xf32>
    %5 = tpu.concatenate %2, %3, %4 in 0 : vector<8x16xf32>, vector<8x16xf32>, vector<8x16xf32> -> vector<24x16xf32>
    %6 = arith.truncf %5 : vector<24x16xf32> to vector<24x16xbf16>
    %c0_2 = arith.constant 0 : index
    %c0_3 = arith.constant 0 : index
    %7 = vector.load %arg3[%c0_2, %c0_3] : memref<16x24xbf16, #tpu.memory_space<vmem>>, vector<16x24xbf16>
    %cst = arith.constant dense<0.000000e+00> : vector<16x16xf32>
    %8 = tpu.matmul %7, %6, %cst {dimension_numbers = #tpu.dot_dimension_numbers<[1], [0], [0], [1], [0, 0, 1, 1], [], []>} : vector<16x24xbf16>, vector<24x16xbf16>, vector<16x16xf32> -> vector<16x16xf32>
    %c0_4 = arith.constant 0 : index
    %c0_5 = arith.constant 0 : index
    %9 = vector.load %arg4[%c0_4, %c0_5] : memref<16x1xf32, #tpu.memory_space<vmem>>, vector<16x1xf32>
    %10 = vector.broadcast %9 : vector<16x1xf32> to vector<16x16xf32>
    %11 = arith.addf %8, %10 : vector<16x16xf32>
    %12 = vector.extract_strided_slice %11 {offsets = [0, 0], sizes = [8, 16], strides = [1, 1]} : vector<16x16xf32> to vector<8x16xf32>
    %13 = vector.extract_strided_slice %11 {offsets = [8, 0], sizes = [8, 16], strides = [1, 1]} : vector<16x16xf32> to vector<8x16xf32>
    %14 = math.tanh %12 : vector<8x16xf32>
    %cst_6 = arith.constant 0.949999988 : f32
    %15 = vector.broadcast %cst_6 : f32 to vector<8x16xf32>
    %16 = arith.mulf %14, %15 : vector<8x16xf32>
    %cst_7 = arith.constant 5.000000e-02 : f32
    %17 = vector.broadcast %cst_7 : f32 to vector<8x16xf32>
    %18 = arith.mulf %17, %12 : vector<8x16xf32>
    %19 = arith.addf %16, %18 : vector<8x16xf32>
    %cst_8 = arith.constant 5.000000e-01 : f32
    %20 = vector.broadcast %cst_8 : f32 to vector<8x16xf32>
    %21 = arith.mulf %20, %13 : vector<8x16xf32>
    %22 = math.tanh %21 : vector<8x16xf32>
    %cst_9 = arith.constant 1.000000e+00 : f32
    %23 = vector.broadcast %cst_9 : f32 to vector<8x16xf32>
    %24 = arith.addf %22, %23 : vector<8x16xf32>
    %cst_10 = arith.constant 5.000000e-01 : f32
    %25 = vector.broadcast %cst_10 : f32 to vector<8x16xf32>
    %26 = arith.mulf %25, %24 : vector<8x16xf32>
    %27 = arith.mulf %19, %26 : vector<8x16xf32>
    %c0_11 = arith.constant 0 : index
    %c0_12 = arith.constant 0 : index
    %28 = vector.load %arg5[%c0_11, %c0_12] : memref<4x8xbf16, #tpu.memory_space<vmem>>, vector<4x8xbf16>
    %29 = arith.truncf %27 : vector<8x16xf32> to vector<8x16xbf16>
    %cst_13 = arith.constant dense<0.000000e+00> : vector<4x16xf32>
    %30 = tpu.matmul %28, %29, %cst_13 {dimension_numbers = #tpu.dot_dimension_numbers<[1], [0], [0], [1], [0, 0, 1, 1], [], []>} : vector<4x8xbf16>, vector<8x16xbf16>, vector<4x16xf32> -> vector<4x16xf32>
    %c0_14 = arith.constant 0 : index
    %c0_15 = arith.constant 0 : index
    %31 = vector.load %arg6[%c0_14, %c0_15] : memref<4x1xf32, #tpu.memory_space<vmem>>, vector<4x1xf32>
    %32 = vector.broadcast %31 : vector<4x1xf32> to vector<4x16xf32>
    %33 = arith.addf %30, %32 : vector<4x16xf32>
    %34 = vector.extract_strided_slice %1 {offsets = [0, 2], sizes = [4, 16], strides = [1, 1]} : vector<8x20xf32> to vector<4x16xf32>
    %c0_16 = arith.constant 0 : index
    %c0_17 = arith.constant 0 : index
    %c0_18 = arith.constant 0 : index
    %35 = vector.load %arg8[%c0_16, %c0_17, %c0_18] : memref<1x4x16xf32, #tpu.memory_space<vmem>>, vector<1x4x16xf32>
    %36 = vector.shape_cast %35 : vector<1x4x16xf32> to vector<4x16xf32>
    %37 = vector.shape_cast %33 : vector<4x16xf32> to vector<1x4x16xf32>
    tpu.vector_store %arg8[%c0_16, %c0_17, %c0_18], %37 {strides = array<i32>} : memref<1x4x16xf32, #tpu.memory_space<vmem>>, vector<1x4x16xf32>,
    %38 = arith.addf %33, %34 : vector<4x16xf32>
    %c0_19 = arith.constant 0 : index
    %c0_20 = arith.constant 0 : index
    %c0_21 = arith.constant 0 : index
    %39 = vector.load %arg7[%c0_19, %c0_20, %c0_21] : memref<1x4x16xf32, #tpu.memory_space<vmem>>, vector<1x4x16xf32>
    %40 = vector.shape_cast %39 : vector<1x4x16xf32> to vector<4x16xf32>
    %41 = vector.shape_cast %38 : vector<4x16xf32> to vector<1x4x16xf32>
    tpu.vector_store %arg7[%c0_19, %c0_20, %c0_21], %41 {strides = array<i32>} : memref<1x4x16xf32, #tpu.memory_space<vmem>>, vector<1x4x16xf32>,
    return
  }
  func.func @transform_0(%arg0: i32, %arg1: i32) -> (i32, i32, i32) {
    %c0_i32 = arith.constant 0 : i32
    %c0_i32_0 = arith.constant 0 : i32
    %c0_i32_1 = arith.constant 0 : i32
    return %arg0, %c0_i32, %c0_i32_0 : i32, i32, i32
  }
  func.func @transform_1(%arg0: i32, %arg1: i32) -> (i32, i32) {
    %c0_i32 = arith.constant 0 : i32
    %c0_i32_0 = arith.constant 0 : i32
    %c0_i32_1 = arith.constant 0 : i32
    return %c0_i32, %c0_i32_0 : i32, i32
  }
  func.func @transform_2(%arg0: i32, %arg1: i32) -> (i32, i32) {
    %c0_i32 = arith.constant 0 : i32
    %c0_i32_0 = arith.constant 0 : i32
    %c0_i32_1 = arith.constant 0 : i32
    return %c0_i32, %c0_i32_0 : i32, i32
  }
  func.func @transform_3(%arg0: i32, %arg1: i32) -> (i32, i32) {
    %c0_i32 = arith.constant 0 : i32
    %c0_i32_0 = arith.constant 0 : i32
    %c0_i32_1 = arith.constant 0 : i32
    return %c0_i32, %c0_i32_0 : i32, i32
  }
  func.func @transform_4(%arg0: i32, %arg1: i32) -> (i32, i32) {
    %c0_i32 = arith.constant 0 : i32
    %c0_i32_0 = arith.constant 0 : i32
    %c0_i32_1 = arith.constant 0 : i32
    return %c0_i32, %c0_i32_0 : i32, i32
  }
  func.func @transform_5(%arg0: i32, %arg1: i32) -> (i32, i32, i32) {
    %c0_i32 = arith.constant 0 : i32
    %c0_i32_0 = arith.constant 0 : i32
    return %arg0, %c0_i32, %arg1 : i32, i32, i32
  }
  func.func @transform_6(%arg0: i32, %arg1: i32) -> (i32, i32, i32) {
    %c0_i32 = arith.constant 0 : i32
    %c0_i32_0 = arith.constant 0 : i32
    return %arg0, %c0_i32, %arg1 : i32, i32, i32
  }
}

</mosaic_0001>

<llo_original>
// kernel: tpu_custom_call.1
$region0: #{tpu_custom_call.1}
  #allocation0 [shape = 'u32[]', space=smem, size = 0x4, offset = 0x4, fixed_abs, tag = 'smem constant byte address 0x4 - core index']
  #allocation1 [shape = 'u32[144,128]{1,0:T(1,128)}', space=vmem, size = 0x12000, scoped, tag = 'internal scratch']
  %s0 = inlined_call_operand.vmem [shape: f32[2,8,20], index: 0, kind: input, shape index: {}]
  %s1 = inlined_call_operand.vmem [shape: bf16[16,24], index: 1, kind: input, shape index: {}]
  %s2 = inlined_call_operand.vmem [shape: f32[16,1], index: 2, kind: input, shape index: {}]
  %s3 = inlined_call_operand.vmem [shape: bf16[4,8], index: 3, kind: input, shape index: {}]
  %s4 = inlined_call_operand.vmem [shape: f32[4,1], index: 4, kind: input, shape index: {}]
  %s5 = inlined_call_operand.hbm [shape: f32[2,4,16], index: 5, kind: output, shape index: {0}]
  %s6 = inlined_call_operand.hbm [shape: f32[2,4,16], index: 6, kind: output, shape index: {1}]
  %7 = xla_tuple %s5, %s6
  %s8 = sld [smem:[#allocation0]]
  $region61: #{tpu_custom_call.1} parent=0
    _
  %s10 = ssub.s32 1, %s8
  %s11 = scalar_select 0, %s10, %s8
  $region1: #{tpu_custom_call.1} parent=0
    #allocation2 [shape = 'u8[4096]{0}', space=vmem, size = 0x1000, scoped, tag = 'output window, operand 0']
    #allocation3 [shape = 's32[2]{0}', space=sflag, size = 0x8, scoped, tag = 'scoped memory for tpu_custom_call.1']
    #allocation4 [shape = 'u8[4096]{0}', space=vmem, size = 0x1000, scoped, tag = 'output window, operand 1']
    #allocation5 [shape = 's32[2]{0}', space=sflag, size = 0x8, scoped, tag = 'scoped memory for tpu_custom_call.1']
    %12 = vsyncpa [#allocation3], 0
    %s13 = scalar_lea.sflag [#allocation3], 1
    %14 = vsyncpa %s13, 0
    %15 = vsyncpa [#allocation5], 0
    %s16 = scalar_lea.sflag [#allocation5], 1
    %17 = vsyncpa %s16, 0
    loop: start=0, step=1, limit=4
    $region2: #{tpu_custom_call.1} parent=1 // loop_pre_header
      _
    $region3: #{tpu_custom_call.1} parent=1 // loop_header
      %s19 = sphi 0, %s23
      %p20 = scmp.ge.s32.totalorder %s19, 4
      %s26 = sphi 0, %s38
      %s27 = sphi 0, %s34
      %s28 = sphi 0, %s26
      %s29 = sphi 0, %s27
      %s30 = sphi 0, %s28
      %s31 = sphi 0, %s29
      %s41 = sphi 0, %s43
      %s44 = sphi 0, %s41
      %s45 = sphi 0, %s44
      %s61 = sphi 0, %s45
      %s65 = sphi 0, %s65
      %s67 = sphi 0, %s65
      %s68 = sphi 0, %s67
      %s82 = sphi 0, %s68
      %s86 = sphi 0, %s86
      %s88 = sphi 0, %s86
      %s89 = sphi 0, %s88
      %s103 = sphi 0, %s89
      %s107 = sphi 0, %s107
      %s109 = sphi 0, %s107
      %s110 = sphi 0, %s109
      %s124 = sphi 0, %s110
      %s128 = sphi 0, %s128
      %s130 = sphi 0, %s128
      %s131 = sphi 0, %s130
      %s145 = sphi 0, %s131
      %s153 = sphi 0, %s155
      %s156 = sphi 0, %s153
      %s157 = sphi 0, %s156
      %s173 = sphi 0, %s157
      %s181 = sphi 0, %s183
      %s184 = sphi 0, %s181
      %s185 = sphi 0, %s184
      %s201 = sphi 0, %s185
    $region4: #{tpu_custom_call.1} parent=1 // loop_header_branch
      %22 = sbr.rel (%p20) target = $region8
    $region5: #{tpu_custom_call.1} parent=1 // loop_body
      %s24 = ssub.s32 %s19, 1
      %s25 = ssub.s32 %s19, 2
      %s32 = sadd.s32 1, %s27
      %p33 = scmp.ge.s32.totalorder %s32, 1
      %s34 = scalar_select %p33, 0, %s32
      %s35 = sadd.s32 1, %s26
      %s36 = scalar_select %p33, %s35, %s26
      %p37 = scmp.ge.s32.totalorder %s36, 2
      %s38 = scalar_select %p37, 0, %s36
      %s39 = ssub.s32 %s26, %s38
      %p40 = scmp.eq.s32.totalorder %s39, 0
      %s42 = sadd.s32 %s41, 1
      %s43 = scalar_select %p40, %s41, %s42
      %p46 = pneg %p40
      %p47 = scmp.eq.s32.totalorder %s19, 1
      %p48 = por %p46, %p47
      %p49 = scmp.ne.s32.totalorder %s41, %s44
      %p50 = scmp.eq.s32.totalorder %s19, 0
      %p51 = por %p49, %p50
      %p52 = scmp.ne.s32.totalorder %s41, %s44
      %p53 = scmp.eq.s32.totalorder %s24, 1
      %p54 = por %p52, %p53
      %p55 = scmp.ne.s32.totalorder %s44, %s45
      %p56 = scmp.eq.s32.totalorder %s24, 0
      %p57 = por %p55, %p56
      %p58 = scmp.ne.s32.totalorder %s44, %s45
      %p59 = scmp.eq.s32.totalorder %s25, 1
      %p60 = por %p58, %p59
      %p62 = scmp.ne.s32.totalorder %s45, %s61
      %p63 = scmp.eq.s32.totalorder %s25, 0
      %p64 = por %p62, %p63
      %s66 = sadd.s32 %s65, 1
      %p69 = scmp.eq.s32.totalorder %s19, 1
      %p70 = scmp.ne.s32.totalorder %s65, %s67
      %p71 = scmp.eq.s32.totalorder %s19, 0
      %p72 = por %p70, %p71
      %p73 = scmp.ne.s32.totalorder %s65, %s67
      %p74 = scmp.eq.s32.totalorder %s24, 1
      %p75 = por %p73, %p74
      %p76 = scmp.ne.s32.totalorder %s67, %s68
      %p77 = scmp.eq.s32.totalorder %s24, 0
      %p78 = por %p76, %p77
      %p79 = scmp.ne.s32.totalorder %s67, %s68
      %p80 = scmp.eq.s32.totalorder %s25, 1
      %p81 = por %p79, %p80
      %p83 = scmp.ne.s32.totalorder %s68, %s82
      %p84 = scmp.eq.s32.totalorder %s25, 0
      %p85 = por %p83, %p84
      %s87 = sadd.s32 %s86, 1
      %p90 = scmp.eq.s32.totalorder %s19, 1
      %p91 = scmp.ne.s32.totalorder %s86, %s88
      %p92 = scmp.eq.s32.totalorder %s19, 0
      %p93 = por %p91, %p92
      %p94 = scmp.ne.s32.totalorder %s86, %s88
      %p95 = scmp.eq.s32.totalorder %s24, 1
      %p96 = por %p94, %p95
      %p97 = scmp.ne.s32.totalorder %s88, %s89
      %p98 = scmp.eq.s32.totalorder %s24, 0
      %p99 = por %p97, %p98
      %p100 = scmp.ne.s32.totalorder %s88, %s89
      %p101 = scmp.eq.s32.totalorder %s25, 1
      %p102 = por %p100, %p101
      %p104 = scmp.ne.s32.totalorder %s89, %s103
      %p105 = scmp.eq.s32.totalorder %s25, 0
      %p106 = por %p104, %p105
      %s108 = sadd.s32 %s107, 1
      %p111 = scmp.eq.s32.totalorder %s19, 1
      %p112 = scmp.ne.s32.totalorder %s107, %s109
      %p113 = scmp.eq.s32.totalorder %s19, 0
      %p114 = por %p112, %p113
      %p115 = scmp.ne.s32.totalorder %s107, %s109
      %p116 = scmp.eq.s32.totalorder %s24, 1
      %p117 = por %p115, %p116
      %p118 = scmp.ne.s32.totalorder %s109, %s110
      %p119 = scmp.eq.s32.totalorder %s24, 0
      %p120 = por %p118, %p119
      %p121 = scmp.ne.s32.totalorder %s109, %s110
      %p122 = scmp.eq.s32.totalorder %s25, 1
      %p123 = por %p121, %p122
      %p125 = scmp.ne.s32.totalorder %s110, %s124
      %p126 = scmp.eq.s32.totalorder %s25, 0
      %p127 = por %p125, %p126
      %s129 = sadd.s32 %s128, 1
      %p132 = scmp.eq.s32.totalorder %s19, 1
      %p133 = scmp.ne.s32.totalorder %s128, %s130
      %p134 = scmp.eq.s32.totalorder %s19, 0
      %p135 = por %p133, %p134
      %p136 = scmp.ne.s32.totalorder %s128, %s130
      %p137 = scmp.eq.s32.totalorder %s24, 1
      %p138 = por %p136, %p137
      %p139 = scmp.ne.s32.totalorder %s130, %s131
      %p140 = scmp.eq.s32.totalorder %s24, 0
      %p141 = por %p139, %p140
      %p142 = scmp.ne.s32.totalorder %s130, %s131
      %p143 = scmp.eq.s32.totalorder %s25, 1
      %p144 = por %p142, %p143
      %p146 = scmp.ne.s32.totalorder %s131, %s145
      %p147 = scmp.eq.s32.totalorder %s25, 0
      %p148 = por %p146, %p147
      %s149 = ssub.s32 %s26, %s38
      %s150 = ssub.s32 %s27, %s34
      %s151 = sor.u32 %s149, %s150
      %p152 = scmp.eq.s32.totalorder %s151, 0
      %s154 = sadd.s32 %s153, 1
      %s155 = scalar_select %p152, %s153, %s154
      %p158 = pneg %p152
      %p159 = scmp.eq.s32.totalorder %s19, 1
      %p160 = por %p158, %p159
      %p161 = scmp.ne.s32.totalorder %s153, %s156
      %p162 = scmp.eq.s32.totalorder %s19, 0
      %p163 = por %p161, %p162
      %p164 = scmp.ne.s32.totalorder %s153, %s156
      %p165 = scmp.eq.s32.totalorder %s24, 1
      %p166 = por %p164, %p165
      %p167 = scmp.ne.s32.totalorder %s156, %s157
      %p168 = scmp.eq.s32.totalorder %s24, 0
      %p169 = por %p167, %p168
      %p170 = scmp.ne.s32.totalorder %s156, %s157
      %p171 = scmp.eq.s32.totalorder %s25, 1
      %p172 = por %p170, %p171
      %p174 = scmp.ne.s32.totalorder %s157, %s173
      %p175 = scmp.eq.s32.totalorder %s25, 0
      %p176 = por %p174, %p175
      %s177 = ssub.s32 %s26, %s38
      %s178 = ssub.s32 %s27, %s34
      %s179 = sor.u32 %s177, %s178
      %p180 = scmp.eq.s32.totalorder %s179, 0
      %s182 = sadd.s32 %s181, 1
      %s183 = scalar_select %p180, %s181, %s182
      %p186 = pneg %p180
      %p187 = scmp.eq.s32.totalorder %s19, 1
      %p188 = por %p186, %p187
      %p189 = scmp.ne.s32.totalorder %s181, %s184
      %p190 = scmp.eq.s32.totalorder %s19, 0
      %p191 = por %p189, %p190
      %p192 = scmp.ne.s32.totalorder %s181, %s184
      %p193 = scmp.eq.s32.totalorder %s24, 1
      %p194 = por %p192, %p193
      %p195 = scmp.ne.s32.totalorder %s184, %s185
      %p196 = scmp.eq.s32.totalorder %s24, 0
      %p197 = por %p195, %p196
      %p198 = scmp.ne.s32.totalorder %s184, %s185
      %p199 = scmp.eq.s32.totalorder %s25, 1
      %p200 = por %p198, %p199
      %p202 = scmp.ne.s32.totalorder %s185, %s201
      %p203 = scmp.eq.s32.totalorder %s25, 0
      %p204 = por %p202, %p203
      %p205 = scmp.le.s32.totalorder 1, %s19
      %p206 = scmp.lt.s32.totalorder %s19, 3
      %p207 = pnand %p205, %p206
      %p208 = pneg %p207
      // Predicated region
      $region9: #{tpu_custom_call.1} parent=5 // pred_check
        _
      $region10: #{tpu_custom_call.1} parent=5 // pred_check_branch
        %210 = sbr.rel (%p207) target = $region12
      $region11: #{tpu_custom_call.1} parent=5 // pred_region
        %s211 = ssub.s32 %s19, 1
        // Predicated region
        $region13: #{tpu_custom_call.1} parent=11 // pred_check
          %p212 = pneg %p78
        $region14: #{tpu_custom_call.1} parent=11 // pred_check_branch
          %214 = sbr.rel (%p212) target = $region16
        $region15: #{tpu_custom_call.1} parent=11 // pred_region
          _
        $region16: #{tpu_custom_call.1} parent=11 // pred_fallthru
          _
        // Predicated region
        $region17: #{tpu_custom_call.1} parent=11 // pred_check
          %p215 = pneg %p99
        $region18: #{tpu_custom_call.1} parent=11 // pred_check_branch
          %217 = sbr.rel (%p215) target = $region20
        $region19: #{tpu_custom_call.1} parent=11 // pred_region
          _
        $region20: #{tpu_custom_call.1} parent=11 // pred_fallthru
          _
        // Predicated region
        $region21: #{tpu_custom_call.1} parent=11 // pred_check
          %p218 = pneg %p120
        $region22: #{tpu_custom_call.1} parent=11 // pred_check_branch
          %220 = sbr.rel (%p218) target = $region24
        $region23: #{tpu_custom_call.1} parent=11 // pred_region
          _
        $region24: #{tpu_custom_call.1} parent=11 // pred_fallthru
          _
        // Predicated region
        $region25: #{tpu_custom_call.1} parent=11 // pred_check
          %p221 = pneg %p141
        $region26: #{tpu_custom_call.1} parent=11 // pred_check_branch
          %223 = sbr.rel (%p221) target = $region28
        $region27: #{tpu_custom_call.1} parent=11 // pred_region
          _
        $region28: #{tpu_custom_call.1} parent=11 // pred_fallthru
          _
      $region12: #{tpu_custom_call.1} parent=5 // pred_fallthru
        _
      %p224 = scmp.lt.s32.totalorder %s19, 2
      // Predicated region
      $region29: #{tpu_custom_call.1} parent=5 // pred_check
        %p225 = pneg %p224
      $region30: #{tpu_custom_call.1} parent=5 // pred_check_branch
        %227 = sbr.rel (%p225) target = $region32
      $region31: #{tpu_custom_call.1} parent=5 // pred_region
        // Predicated region
        $region33: #{tpu_custom_call.1} parent=31 // pred_check
          %p228 = pneg %p51
        $region34: #{tpu_custom_call.1} parent=31 // pred_check_branch
          %230 = sbr.rel (%p228) target = $region36
        $region35: #{tpu_custom_call.1} parent=31 // pred_region
          %p231 = scmp.lt.s32.totalorder %s26, 1
          %s232 = scalar_select %p231, %s26, 1
          %s233 = smul.addr %s232, 8
          %s234 = scalar_lea.vmem %s0, %s233
        $region36: #{tpu_custom_call.1} parent=31 // pred_fallthru
          _
      $region32: #{tpu_custom_call.1} parent=5 // pred_fallthru
        _
      %p235 = scmp.le.s32.totalorder 1, %s19
      %p236 = scmp.lt.s32.totalorder %s19, 3
      %p237 = pnand %p235, %p236
      %p238 = pneg %p237
      // Predicated region
      $region37: #{tpu_custom_call.1} parent=5 // pred_check
        _
      $region38: #{tpu_custom_call.1} parent=5 // pred_check_branch
        %240 = sbr.rel (%p237) target = $region40
      $region39: #{tpu_custom_call.1} parent=5 // pred_region
        %s241 = ssub.s32 %s19, 1
        %p242 = scmp.lt.s32.totalorder %s28, 1
        %s243 = scalar_select %p242, %s28, 1
        %s244 = smul.addr %s243, 8
        %s245 = scalar_lea.vmem %s0, %s244
        %p246 = pneg %p57
        %p247 = pneg %p54
        %p248 = pneg %p78
        %p249 = pneg %p75
        %p250 = pneg %p99
        %p251 = pneg %p96
        %p252 = pneg %p120
        %p253 = pneg %p117
        %p254 = pneg %p141
        %p255 = pneg %p138
        %p256 = pneg %p169
        %p257 = pneg %p166
        %s258 = sand.u32 %s156, 1
        %s259 = scalar_lea.sflag [#allocation3], %s258
        %s260 = sand.u32 %s156, 1
        %s261 = smul.addr %s260, 4
        %s262 = scalar_lea.vmem [#allocation2], %s261
        %p263 = pneg %p197
        %p264 = pneg %p194
        %s265 = sand.u32 %s184, 1
        %s266 = scalar_lea.sflag [#allocation5], %s265
        %s267 = sand.u32 %s184, 1
        %s268 = smul.addr %s267, 4
        %s269 = scalar_lea.vmem [#allocation4], %s268
        %p270 = scmp.lt.s32.totalorder %s28, 1
        %s271 = scalar_select %p270, %s28, 1
        %s272 = smul.addr %s271, 8
        %s273 = scalar_lea.vmem %s0, %s272
        %v275 = vld [vmem:[%s273] sm:$0xff]
        %277 = vrot.lane.b32.xlu0 %v275, 126
        %v278 = vpop.permute.xlu0 %277
        %280 = vrot.lane.b32.xlu0 %v275, 124
        %v281 = vpop.permute.xlu0 %280
        %v283 = vpack.c.bf16 %v278, %v275
        %v284 = vpack.c.bf16 %v281, %v281
        %v285 = vld [vmem:[%s1] sm:$0xf]
        %v286 = vld [vmem:[%s1 + $0x4] sm:$0xf]
        %v287 = vld [vmem:[%s2] sm:$0xff]
        %v288 = vld [vmem:[%s2 + $0x8] sm:$0xff]
        %290 = vset.pattern.permute.xlu0 0
        %291 = vperm.xlu0 %290, %v287
        %v292 = vpop.permute.xlu0 %291
        %295 = vset.pattern.permute.xlu0 0
        %296 = vperm.xlu0 %295, %v288
        %v297 = vpop.permute.xlu0 %296
        %v301 = vunpack.c.l.b16 %v285
        %v302 = vunpack.c.l.b16 %v286
        %v303 = vpack.c.b16 %v302, %v301
        %vm304 = vcmask 195584
        %v306 = vsel %vm304, %v303, 0
        %vm308 = vcmask 1043456
        %v310 = vsel %vm308, %v284, 0
        %312 = vmatprep.subr.bf16.mxu0 0
        %313 = vmatpush1.bf16.msra.mxu0 %v283
        %314 = vmatprep.subr.bf16.mxu0 0
        %315 = vmatpush1.bf16.msra.mxu0 %v310
        %316 = vmatprep.subr.bf16.mxu0 0
        %317 = vmatpush1.bf16.msra.mxu0 0
        %318 = vmatprep.subr.bf16.mxu0 0
        %319 = vmatpush1.bf16.msra.mxu0 0
        %320 = vmatprep.subr.bf16.mxu0 0
        %321 = vmatpush1.bf16.msra.mxu0 0
        %322 = vmatprep.subr.bf16.mxu0 0
        %323 = vmatpush1.bf16.msra.mxu0 0
        %324 = vmatprep.subr.bf16.mxu0 0
        %325 = vmatpush1.bf16.msra.mxu0 0
        %326 = vmatprep.subr.bf16.mxu0 0
        %327 = vmatpush1.bf16.msra.mxu0 0
        %328 = vmatprep.subr.bf16.mxu0 0
        %329 = vmatpush1.bf16.msra.mxu0 0
        %330 = vmatprep.subr.bf16.mxu0 0
        %331 = vmatpush1.bf16.msra.mxu0 0
        %332 = vmatprep.subr.bf16.mxu0 0
        %333 = vmatpush1.bf16.msra.mxu0 0
        %334 = vmatprep.subr.bf16.mxu0 0
        %335 = vmatpush1.bf16.msra.mxu0 0
        %336 = vmatprep.subr.bf16.mxu0 0
        %337 = vmatpush1.bf16.msra.mxu0 0
        %338 = vmatprep.subr.bf16.mxu0 0
        %339 = vmatpush1.bf16.msra.mxu0 0
        %340 = vmatprep.subr.bf16.mxu0 0
        %341 = vmatpush1.bf16.msra.mxu0 0
        %342 = vmatprep.subr.bf16.mxu0 0
        %343 = vmatpush1.bf16.msra.mxu0 0
        %344 = vmatprep.mubr.bf16.mxu0 0
        %345 = vmatmul.mubr.bf16.gmra.mrb[0].mxu0 %v306
        %v346 = vpop.f32.mrb[0].mxu0
        %v347 = vadd.f32 %v292, %v346
        %v348 = vpop.f32.mrb[0].mxu0
        %v349 = vpop.f32.mrb[0].mxu0
        %v350 = vadd.f32 %v297, %v349
        %v351 = vpop.f32.mrb[0].mxu0
        %352 = vdwg.mxu0
        %v353 = vtanh.pop %v347
        %v354 = vmul.f32 %v353, 0.95
        %v355 = vmul.f32 %v347, 0.05
        %v356 = vadd.f32 %v354, %v355
        %v357 = vmul.f32 %v350, 0.5
        %v358 = vtanh.pop %v357
        %v359 = vadd.f32 %v358, 1.0
        %v360 = vmul.f32 %v359, 0.5
        %v361 = vmul.f32 %v356, %v360
        %v362 = vld [vmem:[%s3] sm:$0x3]
        %v363 = vpack.c.bf16 %v361, %v361
        %v364 = vld [vmem:[%s4] sm:$0xf]
        %366 = vset.pattern.permute.xlu0 0
        %367 = vperm.xlu0 %366, %v364
        %v368 = vpop.permute.xlu0 %367
        %vm370 = vcmask 64512
        %v372 = vsel %vm370, %v362, 0
        %v375 = vsel %vm308, %v363, 0
        %377 = vmatprep.subr.bf16.mxu0 0
        %378 = vmatpush1.bf16.msra.mxu0 %v375
        %379 = vmatprep.subr.bf16.mxu0 0
        %380 = vmatpush1.bf16.msra.mxu0 0
        %381 = vmatprep.subr.bf16.mxu0 0
        %382 = vmatpush1.bf16.msra.mxu0 0
        %383 = vmatprep.subr.bf16.mxu0 0
        %384 = vmatpush1.bf16.msra.mxu0 0
        %385 = vmatprep.subr.bf16.mxu0 0
        %386 = vmatpush1.bf16.msra.mxu0 0
        %387 = vmatprep.subr.bf16.mxu0 0
        %388 = vmatpush1.bf16.msra.mxu0 0
        %389 = vmatprep.subr.bf16.mxu0 0
        %390 = vmatpush1.bf16.msra.mxu0 0
        %391 = vmatprep.subr.bf16.mxu0 0
        %392 = vmatpush1.bf16.msra.mxu0 0
        %393 = vmatprep.subr.bf16.mxu0 0
        %394 = vmatpush1.bf16.msra.mxu0 0
        %395 = vmatprep.subr.bf16.mxu0 0
        %396 = vmatpush1.bf16.msra.mxu0 0
        %397 = vmatprep.subr.bf16.mxu0 0
        %398 = vmatpush1.bf16.msra.mxu0 0
        %399 = vmatprep.subr.bf16.mxu0 0
        %400 = vmatpush1.bf16.msra.mxu0 0
        %401 = vmatprep.subr.bf16.mxu0 0
        %402 = vmatpush1.bf16.msra.mxu0 0
        %403 = vmatprep.subr.bf16.mxu0 0
        %404 = vmatpush1.bf16.msra.mxu0 0
        %405 = vmatprep.subr.bf16.mxu0 0
        %406 = vmatpush1.bf16.msra.mxu0 0
        %407 = vmatprep.subr.bf16.mxu0 0
        %408 = vmatpush1.bf16.msra.mxu0 0
        %409 = vmatprep.mubr.bf16.mxu0 0
        %410 = vmatmul.mubr.bf16.gmra.mrb[0].mxu0 %v372
        %v411 = vpop.f32.mrb[0].mxu0
        %v412 = vadd.f32 %v368, %v411
        %v413 = vpop.f32.mrb[0].mxu0
        %v414 = vpop.f32.mrb[0].mxu0
        %v415 = vpop.f32.mrb[0].mxu0
        %416 = vdwg.mxu0
        %vm417 = vcmask 125952
        %418 = vst.msk [vmem:[%s269] sm:$0xf] %vm417, %v412
        %v419 = vadd.f32 %v412, %v278
        %420 = vst.msk [vmem:[%s262] sm:$0xf] %vm417, %v419
        %s421 = sand.u32 %s156, 1
        %s422 = scalar_lea.sflag [#allocation3], %s421
        %s423 = sand.u32 %s156, 1
        %s424 = smul.addr %s423, 4
        %s425 = scalar_lea.vmem [#allocation2], %s424
        %s426 = sand.u32 %s184, 1
        %s427 = scalar_lea.sflag [#allocation5], %s426
        %s428 = sand.u32 %s184, 1
        %s429 = smul.addr %s428, 4
        %s430 = scalar_lea.vmem [#allocation4], %s429
        // Predicated region
        $region41: #{tpu_custom_call.1} parent=39 // pred_check
          %p431 = pneg %p166
        $region42: #{tpu_custom_call.1} parent=39 // pred_check_branch
          %433 = sbr.rel (%p431) target = $region44
        $region43: #{tpu_custom_call.1} parent=39 // pred_region
          %s435 = ssub.s32 64, 64
          %436 = vsyncadd %s422, %s435
          %s437 = sadd.s32 %s29, %s28
          %s438 = smul.addr %s437, 64
          %s439 = scalar_lea.hbm %s5, %s438
          %s441 = sshll.u32 %s425, 4
          %s442 = int_to_ptr.vmem [resolvable:$true] %s441
          %444 = dma.vmem_to_hbm [thread:$0]  %s442, 64, %s439, %s422
        $region44: #{tpu_custom_call.1} parent=39 // pred_fallthru
          _
        // Predicated region
        $region45: #{tpu_custom_call.1} parent=39 // pred_check
          %p445 = pneg %p194
        $region46: #{tpu_custom_call.1} parent=39 // pred_check_branch
          %447 = sbr.rel (%p445) target = $region48
        $region47: #{tpu_custom_call.1} parent=39 // pred_region
          %s449 = ssub.s32 64, 64
          %450 = vsyncadd %s427, %s449
          %s451 = sadd.s32 %s29, %s28
          %s452 = smul.addr %s451, 64
          %s453 = scalar_lea.hbm %s6, %s452
          %s455 = sshll.u32 %s430, 4
          %s456 = int_to_ptr.vmem [resolvable:$true] %s455
          %458 = dma.vmem_to_hbm [thread:$0]  %s456, 64, %s453, %s427
        $region48: #{tpu_custom_call.1} parent=39 // pred_fallthru
          _
      $region40: #{tpu_custom_call.1} parent=5 // pred_fallthru
        _
      %p459 = scmp.le.s32.totalorder 2, %s19
      // Predicated region
      $region49: #{tpu_custom_call.1} parent=5 // pred_check
        %p460 = pneg %p459
      $region50: #{tpu_custom_call.1} parent=5 // pred_check_branch
        %462 = sbr.rel (%p460) target = $region52
      $region51: #{tpu_custom_call.1} parent=5 // pred_region
        %s463 = ssub.s32 %s19, 2
        // Predicated region
        $region53: #{tpu_custom_call.1} parent=51 // pred_check
          %p464 = pneg %p172
        $region54: #{tpu_custom_call.1} parent=51 // pred_check_branch
          %466 = sbr.rel (%p464) target = $region56
        $region55: #{tpu_custom_call.1} parent=51 // pred_region
          %s467 = sand.u32 %s157, 1
          %s468 = scalar_lea.sflag [#allocation3], %s467
          %s469 = sand.u32 %s157, 1
          %s470 = smul.addr %s469, 4
          %s471 = scalar_lea.vmem [#allocation2], %s470
          %472 = dma.done %s468, 64
        $region56: #{tpu_custom_call.1} parent=51 // pred_fallthru
          _
        // Predicated region
        $region57: #{tpu_custom_call.1} parent=51 // pred_check
          %p473 = pneg %p200
        $region58: #{tpu_custom_call.1} parent=51 // pred_check_branch
          %475 = sbr.rel (%p473) target = $region60
        $region59: #{tpu_custom_call.1} parent=51 // pred_region
          %s476 = sand.u32 %s185, 1
          %s477 = scalar_lea.sflag [#allocation5], %s476
          %s478 = sand.u32 %s185, 1
          %s479 = smul.addr %s478, 4
          %s480 = scalar_lea.vmem [#allocation4], %s479
          %481 = dma.done %s477, 64
        $region60: #{tpu_custom_call.1} parent=51 // pred_fallthru
          _
      $region52: #{tpu_custom_call.1} parent=5 // pred_fallthru
        _
    $region6: #{tpu_custom_call.1} parent=1 // loop_footer
      %s23 = sadd.s32 1, %s19
    $region7: #{tpu_custom_call.1} parent=1 // loop_footer_branch
      %18 = sbr.rel target = $region3
    $region8: #{tpu_custom_call.1} parent=1 // loop_exit
      _
    %482 = vsyncpa [#allocation3], 1
    %s483 = scalar_lea.sflag [#allocation3], 1
    %484 = vsyncpa %s483, 1
    %485 = vsyncpa [#allocation5], 1
    %s486 = scalar_lea.sflag [#allocation5], 1
    %487 = vsyncpa %s486, 1

</llo_original>
